<compile_context>
chip_gen: v7x
topology: tpu7x:2x2x1
jax: 0.10.0
libtpu: 0.0.40
codegen_flags: <defaults>
</compile_context>

<pallas_src>
import functools

import jax
import jax.numpy as jnp
from jax.experimental import pallas as pl
from jax.experimental.pallas import tpu as pltpu


def _wan_rmsnorm_kernel(x_ref, w_ref, o_ref, *, eps, c, x_dtype):
    # Compute in float32 (matches x.float() in the torch module).
    x_f32 = x_ref[...].astype(jnp.float32)
    # Sum of squares (VALU + one cross-lane reduce), divided by the true C to
    # match torch's mean = sum / C exactly.
    ssq = jnp.sum(x_f32 * x_f32, axis=-1, keepdims=True)
    normed = x_f32 * jax.lax.rsqrt(ssq / c + eps)  # rsqrt lives on the EUP slot
    # torch: self._norm(x.float()).type_as(x) * self.weight
    normed = normed.astype(x_dtype)
    # weight is pre-cast to the output dtype in the wrapper (no per-step cast).
    o_ref[...] = normed.astype(o_ref.dtype) * w_ref[...]


def _sublane_multiple(itemsize):
    # Required row multiple for a tiled (non-full-extent) second-to-last dim.
    return max(8, 32 // int(itemsize))


def _vmem_budget_bytes():
    """(working-set budget, scoped VMEM limit), safe across v5e/v6e/v7x."""
    try:
        cap = int(pltpu.get_tpu_info().vmem_capacity_bytes)
    except Exception:
        cap = 64 << 20  # conservative fallback: v7x-sized per-core VMEM
    # Scoped limit: 3/4 of physical VMEM (48 MiB on v7x, 96 MiB on v5e/v6e).
    limit = max(32 << 20, (cap * 3) // 4)
    # Working-set budget: a few MiB of headroom under the limit.
    budget = max(16 << 20, limit - (8 << 20))
    return int(budget), int(limit)


def _pick_block_rows(rows, c, x_itemsize, out_itemsize, vmem_budget):
    # Per-row HBM traffic (read x + write out) and VMEM footprint
    # (double-buffered input + double-buffered output + one f32 temp tile;
    # Mosaic mostly fuses the elementwise chain but we keep the temp as slack).
    traffic_per_row = c * (x_itemsize + out_itemsize)
    vmem_per_row = c * (2 * x_itemsize + 2 * out_itemsize + 4)

    vmem_cand = max(1, vmem_budget // vmem_per_row)
    # Target ~32 MiB of HBM traffic per grid step (never below ~8 MiB) so the
    # ~0.35 us/step overhead is well amortized even at v7x's 3.2 TB/s.
    hi = -(-(32 << 20) // traffic_per_row)
    lo = -(-(8 << 20) // traffic_per_row)
    cand = min(vmem_cand, hi)
    if cand < lo:
        cand = min(vmem_cand, lo)

    if cand >= rows:
        return rows  # single block == full first dim: always a legal block shape

    mult = max(_sublane_multiple(x_itemsize), _sublane_multiple(out_itemsize))
    cand = max(mult, (cand // mult) * mult)
    if cand >= rows:
        return rows  # tiny-input / tiny-budget clamp: never exceed the array
    return cand


def wan_rms_norm(x, weight, eps=1e-5, *, block_rows=None, out_dtype=None):
    """x: [B, L, C]; weight: [C].  Returns RMS-normalized x * weight.

    out_dtype: optional override of the output dtype (e.g. jnp.bfloat16 to cut
    write traffic when downstream consumes bf16).  Default follows torch dtype
    promotion of x and weight.
    """
    B, L, C = x.shape
    rows = B * L
    if out_dtype is None:
        out_dtype = jnp.promote_types(x.dtype, weight.dtype)
    out_dtype = jnp.dtype(out_dtype)

    # Flatten to [rows, C]; hoist the weight cast out of the kernel.
    x2 = x.reshape(rows, C)
    w2 = weight.astype(out_dtype).reshape(1, C)

    x_itemsize = jnp.dtype(x.dtype).itemsize
    out_itemsize = out_dtype.itemsize
    vmem_budget, vmem_limit = _vmem_budget_bytes()

    if block_rows is None:
        block_rows = _pick_block_rows(rows, C, x_itemsize, out_itemsize,
                                      vmem_budget)

    grid = (pl.cdiv(rows, block_rows),)  # last block may be partial (masked store)

    kernel = functools.partial(_wan_rmsnorm_kernel, eps=float(eps),
                               c=float(C), x_dtype=x.dtype)

    # Last block dim is the full channel extent: legal for any C (no 128-pad,
    # no host-side pad/slice round trips). For C % 128 != 0 the store is a
    # masked vst.msk, which is far cheaper than two extra full-tensor copies.
    # TODO(synk): on v7x, verify both TensorCores execute this 1-D grid; if
    # profiling shows a single TC, switch the row axis to pltpu.CORE_PARALLEL
    # (or split the row range via pl.core_map over a TensorCore mesh).
    out2 = pl.pallas_call(
        kernel,
        out_shape=jax.ShapeDtypeStruct((rows, C), out_dtype),
        grid=grid,
        in_specs=[
            pl.BlockSpec((block_rows, C), lambda i: (i, 0)),  # x row tile
            pl.BlockSpec((1, C), lambda i: (0, 0)),           # weight (VMEM-resident)
        ],
        out_specs=pl.BlockSpec((block_rows, C), lambda i: (i, 0)),
        compiler_params=pltpu.CompilerParams(
            dimension_semantics=("parallel",),
            vmem_limit_bytes=vmem_limit,
        ),
    )(x2, w2)

    return out2.reshape(B, L, C)


def _reference(x, weight, eps=1e-5, out_dtype=None):
    xf = x.astype(jnp.float32)
    normed = xf * jax.lax.rsqrt(jnp.mean(xf * xf, axis=-1, keepdims=True) + eps)
    normed = normed.astype(x.dtype)
    if out_dtype is None:
        out_dtype = jnp.promote_types(x.dtype, weight.dtype)
    return normed.astype(out_dtype) * weight.astype(out_dtype)


if __name__ == "__main__":
    key = jax.random.PRNGKey(0)

    # Case 1: small [B, L, C] matching the module contract.  C=32 < 128
    # exercises the non-128-multiple (masked-store) path with no host pad/slice.
    B, L, C = 2, 8, 32
    x = jax.random.normal(key, (B, L, C), dtype=jnp.float32)
    weight = jnp.ones((C,), dtype=jnp.float32)  # nn.Parameter(torch.ones(dim))
    out = jax.block_until_ready(wan_rms_norm(x, weight, eps=1e-5))
    ref = _reference(x, weight, eps=1e-5)
    assert out.shape == (B, L, C), out.shape
    assert out.dtype == ref.dtype, (out.dtype, ref.dtype)
    assert jnp.allclose(out, ref, atol=1e-5, rtol=1e-5), "f32 mismatch vs reference"

    # Case 2: bf16 input, rows not a multiple of the row tile (partial last
    # block via the cdiv grid) and C a multiple of 128.  Torch-promoted f32 out.
    B2, L2, C2 = 3, 8, 128
    k1, k2 = jax.random.split(key)
    xb = jax.random.normal(k1, (B2, L2, C2), dtype=jnp.float32).astype(jnp.bfloat16)
    wb = jnp.ones((C2,), dtype=jnp.float32)
    outb = jax.block_until_ready(wan_rms_norm(xb, wb, eps=1e-5, block_rows=16))
    refb = _reference(xb, wb, eps=1e-5)
    assert outb.shape == (B2, L2, C2), outb.shape
    assert outb.dtype == refb.dtype, (outb.dtype, refb.dtype)
    assert jnp.allclose(outb.astype(jnp.float32), refb.astype(jnp.float32),
                        atol=2e-2, rtol=2e-2), "bf16 mismatch vs reference"

    # Case 3: opt-in bf16 output (halves write traffic; deviates from torch
    # promotion by design).
    outc = jax.block_until_ready(
        wan_rms_norm(xb, wb, eps=1e-5, out_dtype=jnp.bfloat16))
    refc = _reference(xb, wb, eps=1e-5, out_dtype=jnp.bfloat16)
    assert outc.dtype == jnp.bfloat16, outc.dtype
    assert jnp.allclose(outc.astype(jnp.float32), refc.astype(jnp.float32),
                        atol=2e-2, rtol=2e-2), "bf16-out mismatch vs reference"

    print("KERNEL_OK")
</pallas_src>

<mosaic_0001>
module attributes {stable_mosaic.version = 11 : i64} {
  func.func @_wan_rmsnorm_kernel(%arg0: i32, %arg1: memref<16x32xf32, #tpu.memory_space<vmem>>, %arg2: memref<1x32xf32, #tpu.memory_space<vmem>>, %arg3: memref<16x32xf32, #tpu.memory_space<vmem>>) attributes {dimension_semantics = [#tpu.dimension_semantics<parallel>], iteration_bounds = array<i64: 1>, scalar_prefetch = 0 : i64, scratch_operands = 0 : i64, tpu.core_type = #tpu.core_type<tc>, window_params = [{transform_indices = @transform_0, window_bounds = array<i64: 16, 32>}, {pipeline_mode = #tpu.pipeline_mode<synchronous>, transform_indices = @transform_1, window_bounds = array<i64: 1, 32>}, {transform_indices = @transform_2, window_bounds = array<i64: 16, 32>}]} {
    %c0 = arith.constant 0 : index
    %c0_0 = arith.constant 0 : index
    %0 = vector.load %arg1[%c0, %c0_0] : memref<16x32xf32, #tpu.memory_space<vmem>>, vector<16x32xf32>
    %1 = arith.mulf %0, %0 : vector<16x32xf32>
    %cst = arith.constant dense<0.000000e+00> : vector<16xf32>
    %2 = vector.multi_reduction <add>, %1, %cst [1] : vector<16x32xf32> to vector<16xf32>
    %3 = vector.shape_cast %2 : vector<16xf32> to vector<16x1xf32>
    %cst_1 = arith.constant 3.200000e+01 : f32
    %4 = vector.broadcast %cst_1 : f32 to vector<16x1xf32>
    %5 = arith.divf %3, %4 : vector<16x1xf32>
    %cst_2 = arith.constant 9.99999974E-6 : f32
    %6 = vector.broadcast %cst_2 : f32 to vector<16x1xf32>
    %7 = arith.addf %5, %6 : vector<16x1xf32>
    %8 = math.rsqrt %7 : vector<16x1xf32>
    %9 = vector.broadcast %8 : vector<16x1xf32> to vector<16x32xf32>
    %10 = arith.mulf %0, %9 : vector<16x32xf32>
    %c0_3 = arith.constant 0 : index
    %c0_4 = arith.constant 0 : index
    %11 = vector.load %arg2[%c0_3, %c0_4] : memref<1x32xf32, #tpu.memory_space<vmem>>, vector<1x32xf32>
    %12 = vector.broadcast %11 : vector<1x32xf32> to vector<16x32xf32>
    %13 = arith.mulf %10, %12 : vector<16x32xf32>
    %c0_5 = arith.constant 0 : index
    %c0_6 = arith.constant 0 : index
    %14 = vector.load %arg3[%c0_5, %c0_6] : memref<16x32xf32, #tpu.memory_space<vmem>>, vector<16x32xf32>
    tpu.vector_store %arg3[%c0_5, %c0_6], %13 {strides = array<i32>} : memref<16x32xf32, #tpu.memory_space<vmem>>, vector<16x32xf32>,
    return
  }
  func.func @transform_0(%arg0: i32) -> (i32, i32) {
    %c0_i32 = arith.constant 0 : i32
    %c0_i32_0 = arith.constant 0 : i32
    return %arg0, %c0_i32 : i32, i32
  }
  func.func @transform_1(%arg0: i32) -> (i32, i32) {
    %c0_i32 = arith.constant 0 : i32
    %c0_i32_0 = arith.constant 0 : i32
    %c0_i32_1 = arith.constant 0 : i32
    return %c0_i32, %c0_i32_0 : i32, i32
  }
  func.func @transform_2(%arg0: i32) -> (i32, i32) {
    %c0_i32 = arith.constant 0 : i32
    %c0_i32_0 = arith.constant 0 : i32
    return %arg0, %c0_i32 : i32, i32
  }
}

</mosaic_0001>

<llo_original>
// kernel: tpu_custom_call.1
$region0: #{tpu_custom_call.1}
  #allocation0 [shape = 'u32[]', space=smem, size = 0x4, offset = 0x4, fixed_abs, tag = 'smem constant byte address 0x4 - core index']
  #allocation1 [shape = 'u32[144,128]{1,0:T(1,128)}', space=vmem, size = 0x12000, scoped, tag = 'internal scratch']
  %s0 = inlined_call_operand.hbm [shape: f32[16,32], index: 0, kind: input, shape index: {}]
  %s1 = inlined_call_operand.vmem [shape: f32[1,32], index: 1, kind: input, shape index: {}]
  %s2 = inlined_call_operand.hbm [shape: f32[16,32], index: 2, kind: output, shape index: {}]
  %s3 = sld [smem:[#allocation0]]
  $region22: #{tpu_custom_call.1} parent=0
    _
  %s5 = ssub.s32 1, %s3
  %s6 = scalar_select 0, %s5, %s3
  $region1: #{tpu_custom_call.1} parent=0
    #allocation2 [shape = 'u8[8192]{0}', space=vmem, size = 0x2000, scoped, tag = 'input window, operand 0, single buffered']
    #allocation3 [shape = 's32[1]{0}', space=sflag, size = 0x4, scoped, tag = 'scoped memory for tpu_custom_call.1']
    #allocation4 [shape = 's32[1]{0}', space=sflag, size = 0x4, scoped, tag = 'scoped memory for tpu_custom_call.1']
    #allocation5 [shape = 'u8[8192]{0}', space=vmem, size = 0x2000, scoped, tag = 'output window, operand 0, single buffered']
    %7 = vsyncpa [#allocation3], 0
    %8 = vsyncpa [#allocation4], 0
    // Predicated region
    $region2: #{tpu_custom_call.1} parent=1 // pred_check
      _
    $region3: #{tpu_custom_call.1} parent=1 // pred_check_branch
      %10 = sbr.rel (0) target = $region5
    $region4: #{tpu_custom_call.1} parent=1 // pred_region
      %s12 = ssub.s32 256, 256
      %13 = vsyncadd [#allocation3], %s12
      %s14 = sshll.u32 [#allocation2], 4
      %s15 = int_to_ptr.vmem [resolvable:$true] %s14
      %20 = dma.hbm_to_vmem [thread:$0]  %s0, 256, %s15, [#allocation3], 128, 128, 8
    $region5: #{tpu_custom_call.1} parent=1 // pred_fallthru
      _
    // Predicated region
    $region6: #{tpu_custom_call.1} parent=1 // pred_check
      _
    $region7: #{tpu_custom_call.1} parent=1 // pred_check_branch
      %22 = sbr.rel (0) target = $region9
    $region8: #{tpu_custom_call.1} parent=1 // pred_region
      _
    $region9: #{tpu_custom_call.1} parent=1 // pred_fallthru
      _
    // Predicated region
    $region10: #{tpu_custom_call.1} parent=1 // pred_check
      _
    $region11: #{tpu_custom_call.1} parent=1 // pred_check_branch
      %24 = sbr.rel (0) target = $region13
    $region12: #{tpu_custom_call.1} parent=1 // pred_region
      %25 = dma.done [#allocation3], 256
    $region13: #{tpu_custom_call.1} parent=1 // pred_fallthru
      _
    %v26 = vld [vmem:[#allocation2] sm:$0xff]
    %v27 = vld [vmem:[#allocation2 + $0x8] sm:$0xff]
    %v28 = vmul.f32 %v26, %v26
    %v29 = vmul.f32 %v27, %v27
    %vm30 = vcmask 261120
    %v31 = vsel %vm30, %v28, 0.0
    %32 = vadd.xlane.f32.xlu0 %v31
    %v33 = vpop.xlane.xlu0 %32
    %v34 = vsel %vm30, %v29, 0.0
    %35 = vadd.xlane.f32.xlu0 %v34
    %v36 = vpop.xlane.xlu0 %35
    %v37 = vrcp.pop 32.0
    %v38 = vmul.f32 %v33, %v37
    %v39 = vmul.f32 %v36, %v37
    %v40 = vadd.f32 %v38, 1e-05
    %v41 = vadd.f32 %v39, 1e-05
    %v42 = vrsqrt.pop %v40
    %v43 = vrsqrt.pop %v41
    %v44 = vmul.f32 %v26, %v42
    %v45 = vmul.f32 %v27, %v43
    %v46 = vld [vmem:[%s1] sm:$0x1]
    %v48 = vlaneseq
    %v49 = vshrl.u32 %v48, 7
    %v50 = vsub.s32 0, %v49
    %v51 = vrot.slane %v46, %v50
    %v53 = vmul.f32 %v44, %v51
    %v54 = vmul.f32 %v45, %v51
    %55 = vst.msk [vmem:[#allocation5] sm:$0xff] %vm30, %v53
    %56 = vst.msk [vmem:[#allocation5 + $0x8] sm:$0xff] %vm30, %v54
    // Predicated region
    $region14: #{tpu_custom_call.1} parent=1 // pred_check
      _
    $region15: #{tpu_custom_call.1} parent=1 // pred_check_branch
      %58 = sbr.rel (0) target = $region17
    $region16: #{tpu_custom_call.1} parent=1 // pred_region
      %s60 = ssub.s32 256, 256
      %61 = vsyncadd [#allocation4], %s60
      %s62 = sshll.u32 [#allocation5], 4
      %s63 = int_to_ptr.vmem [resolvable:$true] %s62
      %68 = dma.vmem_to_hbm [thread:$0]  %s63, 256, %s2, [#allocation4], 128, 128, 8
    $region17: #{tpu_custom_call.1} parent=1 // pred_fallthru
      _
    // Predicated region
    $region18: #{tpu_custom_call.1} parent=1 // pred_check
      _
    $region19: #{tpu_custom_call.1} parent=1 // pred_check_branch
      %70 = sbr.rel (0) target = $region21
    $region20: #{tpu_custom_call.1} parent=1 // pred_region
      %71 = dma.done [#allocation4], 256
    $region21: #{tpu_custom_call.1} parent=1 // pred_fallthru
      _
    %72 = vsyncpa [#allocation3], 1
    %73 = vsyncpa [#allocation4], 1

</llo_original>
